<compile_context>
chip_gen: v7x
topology: tpu7x:2x2x1
jax: 0.10.0
libtpu: 0.0.40
codegen_flags: <defaults>
</compile_context>

<pallas_src>
import numpy as np
import jax
import jax.numpy as jnp
from jax.experimental import pallas as pl
from jax.experimental.pallas import tpu as pltpu

_LANE = 128        # lane width (last dim)
_SUBLANE = 8       # f32 sublane packing (second-to-last dim)
_BLOCK_M = 256     # batch tile upper bound (coarse tiles amortize grid overhead)


# ----------------------------------------------------------------------------
# Size computation (exact port of mlp_funnel._calc_sizes)
# ----------------------------------------------------------------------------
def _calc_sizes(length, width):
    sizes = np.full(fill_value=int(width), shape=int(length))
    for i in range(len(sizes) - 1):
        ret = sizes[i] // 2
        sizes[i + 1] += sizes[i] - ret
        sizes[i] //= 2
    return [int(s) for s in sizes[::-1]]


def _round_up(x, m):
    return ((x + m - 1) // m) * m


# ----------------------------------------------------------------------------
# Fused Pallas kernel: the whole Linear+Sigmoid chain in one body
# ----------------------------------------------------------------------------
def fused_mlp_kernel(x_ref, w_ref, b_ref, o_ref):
    # x: (tm, P) f32   w: (L, P, P) bf16   b: (L, 1, P) f32   o: (tm, P) f32
    h = x_ref[...]                       # f32 running activation
    num_layers = w_ref.shape[0]          # static
    # Tiny static unroll (L == 4 here).  For large L switch to lax.fori_loop
    # (bounds vreg live ranges) or a grid axis over layers.
    for l in range(num_layers):
        # bf16 MXU operands, f32 accumulation.
        y = jnp.dot(h.astype(jnp.bfloat16), w_ref[l],
                    preferred_element_type=jnp.float32)
        y = y + b_ref[l]                 # (1, P) broadcasts over rows, f32
        # Exact sigmoid, overflow-free: one EUP tanh, f32 VPU math.
        h = 0.5 * jnp.tanh(0.5 * y) + 0.5
    o_ref[...] = h.astype(o_ref.dtype)


# ----------------------------------------------------------------------------
# One-time prepare step: pad + stack parameters (HOISTED out of the forward)
# ----------------------------------------------------------------------------
def prepare_params(params, input_size):
    """Pad/stack (host-side, once) -> bf16 (L,P,P) weights, f32 (L,1,P) biases."""
    L = len(params)
    dims = [int(input_size)] + [int(w.shape[1]) for w, _ in params]
    P = _round_up(max(dims), _LANE)      # common padded feature width
    # NOTE: for funnels whose true widths differ by >128, per-layer padding
    # (ragged stack) avoids K=N=P over-work; at demo shapes P=128 for all.
    w_stack = np.zeros((L, P, P), np.float32)
    b_stack = np.zeros((L, 1, P), np.float32)
    for l, (w, b) in enumerate(params):
        din, dout = int(w.shape[0]), int(w.shape[1])
        w_stack[l, :din, :dout] = np.asarray(w, np.float32)
        b_stack[l, :, :dout] = np.asarray(b, np.float32).reshape(1, dout)
    return (jnp.asarray(w_stack, jnp.bfloat16),
            jnp.asarray(b_stack, jnp.float32),
            dims[-1], P)


# ----------------------------------------------------------------------------
# Hot path: pad activation, one pallas_call (batch-tiled grid), slice back
# ----------------------------------------------------------------------------
def mlp_funnel_forward(x, w_stack, b_stack, dout):
    B, Din = x.shape
    L, P, _ = w_stack.shape

    tm = min(_round_up(B, _SUBLANE), _BLOCK_M)   # coarse batch tile
    Bp = _round_up(B, tm)
    grid_m = Bp // tm

    # Pad the activation (zeros in padded lanes / rows) -- only per-call prep.
    xp = jnp.zeros((Bp, P), jnp.float32).at[:B, :Din].set(x.astype(jnp.float32))

    # VMEM residency: resident weight stack + double-buffered x/o tiles.
    resident = (int(w_stack.size) * 2 + int(b_stack.size) * 4
                + 2 * 2 * tm * P * 4)
    vmem_limit = None
    if resident > 12 * 1024 * 1024:      # past v5e's conservative scoped default
        vmem_limit = min(int(resident * 1.5) + (2 << 20), 96 * 1024 * 1024)

    cost = pl.CostEstimate(
        flops=2 * Bp * L * P * P,
        transcendentals=Bp * L * P,
        bytes_accessed=2 * Bp * P * 4 + int(w_stack.size) * 2
                       + int(b_stack.size) * 4,
    )

    out_p = pl.pallas_call(
        fused_mlp_kernel,
        out_shape=jax.ShapeDtypeStruct((Bp, P), jnp.float32),
        grid=(grid_m,),
        in_specs=[
            pl.BlockSpec((tm, P), lambda i: (i, 0)),        # activation: streamed
            pl.BlockSpec((L, P, P), lambda i: (0, 0, 0)),   # weights: VMEM-resident
            pl.BlockSpec((L, 1, P), lambda i: (0, 0, 0)),   # biases: VMEM-resident
        ],
        out_specs=pl.BlockSpec((tm, P), lambda i: (i, 0)),
        compiler_params=pltpu.CompilerParams(
            dimension_semantics=("parallel",),              # megacore-shard batch
            vmem_limit_bytes=vmem_limit,
        ),
        cost_estimate=cost,
    )(xp, w_stack, b_stack)

    return out_p[:B, :dout]


# ----------------------------------------------------------------------------
# Parameter init (deterministic, torch.nn.Linear-style uniform fan-in bound)
# weights stored as (in_features, out_features) so the kernel does y = x @ W + b
# ----------------------------------------------------------------------------
def init_params(key, input_size, output_size, length, width):
    sizes = [int(input_size)] + _calc_sizes(length, width) + [int(output_size)]
    params = []
    for i in range(len(sizes) - 1):
        key, kw, kb = jax.random.split(key, 3)
        bound = 1.0 / np.sqrt(sizes[i])
        w = jax.random.uniform(kw, (sizes[i], sizes[i + 1]),
                               dtype=jnp.float32, minval=-bound, maxval=bound)
        b = jax.random.uniform(kb, (1, sizes[i + 1]),
                               dtype=jnp.float32, minval=-bound, maxval=bound)
        params.append((w, b))
    return params


# ----------------------------------------------------------------------------
# Demo
# ----------------------------------------------------------------------------
if __name__ == "__main__":
    input_size, output_size = 16, 8
    length, width = 3, 32            # funnel hidden sizes -> [56, 24, 16]
    batch = 4

    key = jax.random.PRNGKey(0)
    key, kx = jax.random.split(key)
    x = jax.random.normal(kx, (batch, input_size), dtype=jnp.float32)

    params = init_params(key, input_size, output_size, length, width)

    # One-time prepare (padding/stacking hoisted out of the per-call path).
    w_stack, b_stack, dout, _P = prepare_params(params, input_size)

    fwd = jax.jit(mlp_funnel_forward, static_argnums=(3,))
    out = jax.block_until_ready(fwd(x, w_stack, b_stack, dout))

    # Matched-precision reference (bf16 matmul operands, f32 accumulate,
    # exact sigmoid) and a pure-f32 reference.
    ref_m = x.astype(jnp.float32)
    ref_f = x.astype(jnp.float32)
    for w, b in params:
        ym = jnp.dot(ref_m.astype(jnp.bfloat16), w.astype(jnp.bfloat16),
                     preferred_element_type=jnp.float32) + b
        ref_m = jax.nn.sigmoid(ym)
        ref_f = jax.nn.sigmoid(ref_f @ w + b)

    assert out.shape == (batch, output_size)
    assert bool(jnp.all(jnp.isfinite(out)))
    # Tight check against the precision-matched reference (exact sigmoid).
    assert bool(jnp.allclose(out, ref_m, atol=2e-3, rtol=2e-3))
    # Loose check against the full-f32 reference (covers bf16 weight quant).
    assert bool(jnp.allclose(out, ref_f, atol=5e-2, rtol=5e-2))

    print("KERNEL_OK")
</pallas_src>

<mosaic_0001>
module attributes {stable_mosaic.version = 11 : i64} {
  func.func @fused_mlp_kernel(%arg0: i32, %arg1: memref<8x128xf32, #tpu.memory_space<vmem>>, %arg2: memref<4x128x128xbf16, #tpu.memory_space<vmem>>, %arg3: memref<4x1x128xf32, #tpu.memory_space<vmem>>, %arg4: memref<8x128xf32, #tpu.memory_space<vmem>>) attributes {dimension_semantics = [#tpu.dimension_semantics<parallel>], iteration_bounds = array<i64: 1>, scalar_prefetch = 0 : i64, scratch_operands = 0 : i64, tpu.core_type = #tpu.core_type<tc>, window_params = [{transform_indices = @transform_0, window_bounds = array<i64: 8, 128>}, {pipeline_mode = #tpu.pipeline_mode<synchronous>, transform_indices = @transform_1, window_bounds = array<i64: 4, 128, 128>}, {pipeline_mode = #tpu.pipeline_mode<synchronous>, transform_indices = @transform_2, window_bounds = array<i64: 4, 1, 128>}, {transform_indices = @transform_3, window_bounds = array<i64: 8, 128>}]} {
    %c0 = arith.constant 0 : index
    %c0_0 = arith.constant 0 : index
    %0 = vector.load %arg1[%c0, %c0_0] : memref<8x128xf32, #tpu.memory_space<vmem>>, vector<8x128xf32>
    %1 = arith.truncf %0 : vector<8x128xf32> to vector<8x128xbf16>
    %c0_1 = arith.constant 0 : index
    %c0_2 = arith.constant 0 : index
    %c0_3 = arith.constant 0 : index
    %2 = vector.load %arg2[%c0_1, %c0_2, %c0_3] : memref<4x128x128xbf16, #tpu.memory_space<vmem>>, vector<1x128x128xbf16>
    %3 = vector.shape_cast %2 : vector<1x128x128xbf16> to vector<128x128xbf16>
    %cst = arith.constant dense<0.000000e+00> : vector<8x128xf32>
    %4 = tpu.matmul %1, %3, %cst {dimension_numbers = #tpu.dot_dimension_numbers<[1], [0], [0], [1], [0, 0, 1, 1], [], []>} : vector<8x128xbf16>, vector<128x128xbf16>, vector<8x128xf32> -> vector<8x128xf32>
    %c0_4 = arith.constant 0 : index
    %c0_5 = arith.constant 0 : index
    %c0_6 = arith.constant 0 : index
    %5 = vector.load %arg3[%c0_4, %c0_5, %c0_6] : memref<4x1x128xf32, #tpu.memory_space<vmem>>, vector<1x1x128xf32>
    %6 = vector.shape_cast %5 : vector<1x1x128xf32> to vector<1x128xf32>
    %7 = vector.broadcast %6 : vector<1x128xf32> to vector<8x128xf32>
    %8 = arith.addf %4, %7 : vector<8x128xf32>
    %cst_7 = arith.constant 5.000000e-01 : f32
    %9 = vector.broadcast %cst_7 : f32 to vector<8x128xf32>
    %10 = arith.mulf %9, %8 : vector<8x128xf32>
    %11 = math.tanh %10 : vector<8x128xf32>
    %cst_8 = arith.constant 5.000000e-01 : f32
    %12 = vector.broadcast %cst_8 : f32 to vector<8x128xf32>
    %13 = arith.mulf %12, %11 : vector<8x128xf32>
    %cst_9 = arith.constant 5.000000e-01 : f32
    %14 = vector.broadcast %cst_9 : f32 to vector<8x128xf32>
    %15 = arith.addf %13, %14 : vector<8x128xf32>
    %16 = arith.truncf %15 : vector<8x128xf32> to vector<8x128xbf16>
    %c1 = arith.constant 1 : index
    %c0_10 = arith.constant 0 : index
    %c0_11 = arith.constant 0 : index
    %17 = vector.load %arg2[%c1, %c0_10, %c0_11] : memref<4x128x128xbf16, #tpu.memory_space<vmem>>, vector<1x128x128xbf16>
    %18 = vector.shape_cast %17 : vector<1x128x128xbf16> to vector<128x128xbf16>
    %cst_12 = arith.constant dense<0.000000e+00> : vector<8x128xf32>
    %19 = tpu.matmul %16, %18, %cst_12 {dimension_numbers = #tpu.dot_dimension_numbers<[1], [0], [0], [1], [0, 0, 1, 1], [], []>} : vector<8x128xbf16>, vector<128x128xbf16>, vector<8x128xf32> -> vector<8x128xf32>
    %c1_13 = arith.constant 1 : index
    %c0_14 = arith.constant 0 : index
    %c0_15 = arith.constant 0 : index
    %20 = vector.load %arg3[%c1_13, %c0_14, %c0_15] : memref<4x1x128xf32, #tpu.memory_space<vmem>>, vector<1x1x128xf32>
    %21 = vector.shape_cast %20 : vector<1x1x128xf32> to vector<1x128xf32>
    %22 = vector.broadcast %21 : vector<1x128xf32> to vector<8x128xf32>
    %23 = arith.addf %19, %22 : vector<8x128xf32>
    %cst_16 = arith.constant 5.000000e-01 : f32
    %24 = vector.broadcast %cst_16 : f32 to vector<8x128xf32>
    %25 = arith.mulf %24, %23 : vector<8x128xf32>
    %26 = math.tanh %25 : vector<8x128xf32>
    %cst_17 = arith.constant 5.000000e-01 : f32
    %27 = vector.broadcast %cst_17 : f32 to vector<8x128xf32>
    %28 = arith.mulf %27, %26 : vector<8x128xf32>
    %cst_18 = arith.constant 5.000000e-01 : f32
    %29 = vector.broadcast %cst_18 : f32 to vector<8x128xf32>
    %30 = arith.addf %28, %29 : vector<8x128xf32>
    %31 = arith.truncf %30 : vector<8x128xf32> to vector<8x128xbf16>
    %c2 = arith.constant 2 : index
    %c0_19 = arith.constant 0 : index
    %c0_20 = arith.constant 0 : index
    %32 = vector.load %arg2[%c2, %c0_19, %c0_20] : memref<4x128x128xbf16, #tpu.memory_space<vmem>>, vector<1x128x128xbf16>
    %33 = vector.shape_cast %32 : vector<1x128x128xbf16> to vector<128x128xbf16>
    %cst_21 = arith.constant dense<0.000000e+00> : vector<8x128xf32>
    %34 = tpu.matmul %31, %33, %cst_21 {dimension_numbers = #tpu.dot_dimension_numbers<[1], [0], [0], [1], [0, 0, 1, 1], [], []>} : vector<8x128xbf16>, vector<128x128xbf16>, vector<8x128xf32> -> vector<8x128xf32>
    %c2_22 = arith.constant 2 : index
    %c0_23 = arith.constant 0 : index
    %c0_24 = arith.constant 0 : index
    %35 = vector.load %arg3[%c2_22, %c0_23, %c0_24] : memref<4x1x128xf32, #tpu.memory_space<vmem>>, vector<1x1x128xf32>
    %36 = vector.shape_cast %35 : vector<1x1x128xf32> to vector<1x128xf32>
    %37 = vector.broadcast %36 : vector<1x128xf32> to vector<8x128xf32>
    %38 = arith.addf %34, %37 : vector<8x128xf32>
    %cst_25 = arith.constant 5.000000e-01 : f32
    %39 = vector.broadcast %cst_25 : f32 to vector<8x128xf32>
    %40 = arith.mulf %39, %38 : vector<8x128xf32>
    %41 = math.tanh %40 : vector<8x128xf32>
    %cst_26 = arith.constant 5.000000e-01 : f32
    %42 = vector.broadcast %cst_26 : f32 to vector<8x128xf32>
    %43 = arith.mulf %42, %41 : vector<8x128xf32>
    %cst_27 = arith.constant 5.000000e-01 : f32
    %44 = vector.broadcast %cst_27 : f32 to vector<8x128xf32>
    %45 = arith.addf %43, %44 : vector<8x128xf32>
    %46 = arith.truncf %45 : vector<8x128xf32> to vector<8x128xbf16>
    %c3 = arith.constant 3 : index
    %c0_28 = arith.constant 0 : index
    %c0_29 = arith.constant 0 : index
    %47 = vector.load %arg2[%c3, %c0_28, %c0_29] : memref<4x128x128xbf16, #tpu.memory_space<vmem>>, vector<1x128x128xbf16>
    %48 = vector.shape_cast %47 : vector<1x128x128xbf16> to vector<128x128xbf16>
    %cst_30 = arith.constant dense<0.000000e+00> : vector<8x128xf32>
    %49 = tpu.matmul %46, %48, %cst_30 {dimension_numbers = #tpu.dot_dimension_numbers<[1], [0], [0], [1], [0, 0, 1, 1], [], []>} : vector<8x128xbf16>, vector<128x128xbf16>, vector<8x128xf32> -> vector<8x128xf32>
    %c3_31 = arith.constant 3 : index
    %c0_32 = arith.constant 0 : index
    %c0_33 = arith.constant 0 : index
    %50 = vector.load %arg3[%c3_31, %c0_32, %c0_33] : memref<4x1x128xf32, #tpu.memory_space<vmem>>, vector<1x1x128xf32>
    %51 = vector.shape_cast %50 : vector<1x1x128xf32> to vector<1x128xf32>
    %52 = vector.broadcast %51 : vector<1x128xf32> to vector<8x128xf32>
    %53 = arith.addf %49, %52 : vector<8x128xf32>
    %cst_34 = arith.constant 5.000000e-01 : f32
    %54 = vector.broadcast %cst_34 : f32 to vector<8x128xf32>
    %55 = arith.mulf %54, %53 : vector<8x128xf32>
    %56 = math.tanh %55 : vector<8x128xf32>
    %cst_35 = arith.constant 5.000000e-01 : f32
    %57 = vector.broadcast %cst_35 : f32 to vector<8x128xf32>
    %58 = arith.mulf %57, %56 : vector<8x128xf32>
    %cst_36 = arith.constant 5.000000e-01 : f32
    %59 = vector.broadcast %cst_36 : f32 to vector<8x128xf32>
    %60 = arith.addf %58, %59 : vector<8x128xf32>
    %c0_37 = arith.constant 0 : index
    %c0_38 = arith.constant 0 : index
    %61 = vector.load %arg4[%c0_37, %c0_38] : memref<8x128xf32, #tpu.memory_space<vmem>>, vector<8x128xf32>
    tpu.vector_store %arg4[%c0_37, %c0_38], %60 {strides = array<i32>} : memref<8x128xf32, #tpu.memory_space<vmem>>, vector<8x128xf32>,
    return
  }
  func.func @transform_0(%arg0: i32) -> (i32, i32) {
    %c0_i32 = arith.constant 0 : i32
    %c0_i32_0 = arith.constant 0 : i32
    return %arg0, %c0_i32 : i32, i32
  }
  func.func @transform_1(%arg0: i32) -> (i32, i32, i32) {
    %c0_i32 = arith.constant 0 : i32
    %c0_i32_0 = arith.constant 0 : i32
    %c0_i32_1 = arith.constant 0 : i32
    %c0_i32_2 = arith.constant 0 : i32
    return %c0_i32, %c0_i32_0, %c0_i32_1 : i32, i32, i32
  }
  func.func @transform_2(%arg0: i32) -> (i32, i32, i32) {
    %c0_i32 = arith.constant 0 : i32
    %c0_i32_0 = arith.constant 0 : i32
    %c0_i32_1 = arith.constant 0 : i32
    %c0_i32_2 = arith.constant 0 : i32
    return %c0_i32, %c0_i32_0, %c0_i32_1 : i32, i32, i32
  }
  func.func @transform_3(%arg0: i32) -> (i32, i32) {
    %c0_i32 = arith.constant 0 : i32
    %c0_i32_0 = arith.constant 0 : i32
    return %arg0, %c0_i32 : i32, i32
  }
}

</mosaic_0001>

<llo_original>
// kernel: mlp_funnel_forward.1
$region0: #{mlp_funnel_forward.1}
  #allocation0 [shape = 'u32[]', space=smem, size = 0x4, offset = 0x4, fixed_abs, tag = 'smem constant byte address 0x4 - core index']
  #allocation1 [shape = 'u32[144,128]{1,0:T(1,128)}', space=vmem, size = 0x12000, scoped, tag = 'internal scratch']
  %s0 = inlined_call_operand.vmem [shape: f32[8,128], index: 0, kind: input, shape index: {}]
  %s1 = inlined_call_operand.hbm [shape: bf16[4,128,128], index: 1, kind: input, shape index: {}]
  %s2 = inlined_call_operand.vmem [shape: f32[4,1,128], index: 2, kind: input, shape index: {}]
  %s3 = inlined_call_operand.vmem [shape: f32[8,128], index: 3, kind: output, shape index: {}]
  %s4 = sld [smem:[#allocation0]]
  $region26: #{mlp_funnel_forward.1} parent=0
    _
  %s6 = ssub.s32 1, %s4
  %s7 = scalar_select 0, %s6, %s4
  $region1: #{mlp_funnel_forward.1} parent=0
    #allocation2 [shape = 'u8[131072]{0}', space=vmem, size = 0x20000, scoped, tag = 'input window, operand 1, single buffered']
    #allocation3 [shape = 's32[1]{0}', space=sflag, size = 0x4, scoped, tag = 'scoped memory for mlp_funnel_forward.1']
    %8 = vsyncpa [#allocation3], 0
    // Predicated region
    $region2: #{mlp_funnel_forward.1} parent=1 // pred_check
      _
    $region3: #{mlp_funnel_forward.1} parent=1 // pred_check_branch
      %10 = sbr.rel (0) target = $region5
    $region4: #{mlp_funnel_forward.1} parent=1 // pred_region
      _
    $region5: #{mlp_funnel_forward.1} parent=1 // pred_fallthru
      _
    // Predicated region
    $region6: #{mlp_funnel_forward.1} parent=1 // pred_check
      _
    $region7: #{mlp_funnel_forward.1} parent=1 // pred_check_branch
      %12 = sbr.rel (0) target = $region9
    $region8: #{mlp_funnel_forward.1} parent=1 // pred_region
      %s14 = ssub.s32 4096, 4096
      %15 = vsyncadd [#allocation3], %s14
      %s16 = sshll.u32 [#allocation2], 4
      %s17 = int_to_ptr.vmem [resolvable:$true] %s16
      %22 = dma.hbm_to_vmem [thread:$0]  %s1, 4096, %s17, [#allocation3], 64, 64, 4
    $region9: #{mlp_funnel_forward.1} parent=1 // pred_fallthru
      _
    // Predicated region
    $region10: #{mlp_funnel_forward.1} parent=1 // pred_check
      _
    $region11: #{mlp_funnel_forward.1} parent=1 // pred_check_branch
      %24 = sbr.rel (0) target = $region13
    $region12: #{mlp_funnel_forward.1} parent=1 // pred_region
      _
    $region13: #{mlp_funnel_forward.1} parent=1 // pred_fallthru
      _
    // Predicated region
    $region14: #{mlp_funnel_forward.1} parent=1 // pred_check
      _
    $region15: #{mlp_funnel_forward.1} parent=1 // pred_check_branch
      %26 = sbr.rel (0) target = $region17
    $region16: #{mlp_funnel_forward.1} parent=1 // pred_region
      %27 = dma.done [#allocation3], 4096
    $region17: #{mlp_funnel_forward.1} parent=1 // pred_fallthru
      _
    %v29 = vld [vmem:[%s0] sm:$0xff]
    %v30 = vpack.c.bf16 %v29, %v29
    %v31 = vld [vmem:[#allocation2] sm:$0xf]
    %v32 = vld [vmem:[#allocation2 + $0x4] sm:$0xf]
    %v33 = vld [vmem:[#allocation2 + $0x8] sm:$0xf]
    %v34 = vld [vmem:[#allocation2 + $0xc] sm:$0xf]
    %v35 = vld [vmem:[#allocation2 + $0x10] sm:$0xf]
    %v36 = vld [vmem:[#allocation2 + $0x14] sm:$0xf]
    %v37 = vld [vmem:[#allocation2 + $0x18] sm:$0xf]
    %v38 = vld [vmem:[#allocation2 + $0x1c] sm:$0xf]
    %v39 = vld [vmem:[#allocation2 + $0x20] sm:$0xf]
    %v40 = vld [vmem:[#allocation2 + $0x24] sm:$0xf]
    %v41 = vld [vmem:[#allocation2 + $0x28] sm:$0xf]
    %v42 = vld [vmem:[#allocation2 + $0x2c] sm:$0xf]
    %v43 = vld [vmem:[#allocation2 + $0x30] sm:$0xf]
    %v44 = vld [vmem:[#allocation2 + $0x34] sm:$0xf]
    %v45 = vld [vmem:[#allocation2 + $0x38] sm:$0xf]
    %v46 = vld [vmem:[#allocation2 + $0x3c] sm:$0xf]
    %v47 = vld [vmem:[%s2] sm:$0x1]
    %v49 = vlaneseq
    %v50 = vshrl.u32 %v49, 7
    %v51 = vsub.s32 0, %v50
    %v52 = vrot.slane %v47, %v51
    %v70 = vunpack.c.l.b16 %v31
    %v71 = vunpack.c.l.b16 %v32
    %v72 = vunpack.c.l.b16 %v33
    %v73 = vunpack.c.l.b16 %v34
    %v74 = vunpack.c.l.b16 %v35
    %v75 = vunpack.c.l.b16 %v36
    %v76 = vunpack.c.l.b16 %v37
    %v77 = vunpack.c.l.b16 %v38
    %v78 = vunpack.c.l.b16 %v39
    %v79 = vunpack.c.l.b16 %v40
    %v80 = vunpack.c.l.b16 %v41
    %v81 = vunpack.c.l.b16 %v42
    %v82 = vunpack.c.l.b16 %v43
    %v83 = vunpack.c.l.b16 %v44
    %v84 = vunpack.c.l.b16 %v45
    %v85 = vunpack.c.l.b16 %v46
    %v86 = vpack.c.b16 %v71, %v70
    %v87 = vpack.c.b16 %v73, %v72
    %v88 = vpack.c.b16 %v75, %v74
    %v89 = vpack.c.b16 %v77, %v76
    %v90 = vpack.c.b16 %v79, %v78
    %v91 = vpack.c.b16 %v81, %v80
    %v92 = vpack.c.b16 %v83, %v82
    %v93 = vpack.c.b16 %v85, %v84
    %102 = vmatprep.subr.bf16.mxu0 0
    %103 = vmatpush1.bf16.msra.mxu0 %v86
    %104 = vmatprep.subr.bf16.mxu0 0
    %105 = vmatpush1.bf16.msra.mxu0 %v87
    %106 = vmatprep.subr.bf16.mxu0 0
    %107 = vmatpush1.bf16.msra.mxu0 %v88
    %108 = vmatprep.subr.bf16.mxu0 0
    %109 = vmatpush1.bf16.msra.mxu0 %v89
    %110 = vmatprep.subr.bf16.mxu0 0
    %111 = vmatpush1.bf16.msra.mxu0 %v90
    %112 = vmatprep.subr.bf16.mxu0 0
    %113 = vmatpush1.bf16.msra.mxu0 %v91
    %114 = vmatprep.subr.bf16.mxu0 0
    %115 = vmatpush1.bf16.msra.mxu0 %v92
    %116 = vmatprep.subr.bf16.mxu0 0
    %117 = vmatpush1.bf16.msra.mxu0 %v93
    %118 = vmatprep.subr.bf16.mxu0 0
    %119 = vmatpush1.bf16.msra.mxu0 0
    %120 = vmatprep.subr.bf16.mxu0 0
    %121 = vmatpush1.bf16.msra.mxu0 0
    %122 = vmatprep.subr.bf16.mxu0 0
    %123 = vmatpush1.bf16.msra.mxu0 0
    %124 = vmatprep.subr.bf16.mxu0 0
    %125 = vmatpush1.bf16.msra.mxu0 0
    %126 = vmatprep.subr.bf16.mxu0 0
    %127 = vmatpush1.bf16.msra.mxu0 0
    %128 = vmatprep.subr.bf16.mxu0 0
    %129 = vmatpush1.bf16.msra.mxu0 0
    %130 = vmatprep.subr.bf16.mxu0 0
    %131 = vmatpush1.bf16.msra.mxu0 0
    %132 = vmatprep.subr.bf16.mxu0 0
    %133 = vmatpush1.bf16.msra.mxu0 0
    %134 = vmatprep.mubr.bf16.mxu0 0
    %135 = vmatmul.mubr.bf16.gmra.mrb[0].mxu0 %v30
    %v136 = vpop.f32.mrb[0].mxu0
    %v137 = vadd.f32 %v52, %v136
    %v138 = vpop.f32.mrb[0].mxu0
    %v139 = vpop.f32.mrb[0].mxu0
    %v140 = vpop.f32.mrb[0].mxu0
    %141 = vdwg.mxu0
    %v142 = vmul.f32 %v137, 0.5
    %v143 = vtanh.pop %v142
    %v144 = vmul.f32 %v143, 0.5
    %v145 = vadd.f32 %v144, 0.5
    %v146 = vpack.c.bf16 %v145, %v145
    %s147 = scalar_lea.vmem [#allocation2], 64
    %v148 = vld [vmem:[%s147] sm:$0xf]
    %v149 = vld [vmem:[%s147 + $0x4] sm:$0xf]
    %v150 = vld [vmem:[%s147 + $0x8] sm:$0xf]
    %v151 = vld [vmem:[%s147 + $0xc] sm:$0xf]
    %v152 = vld [vmem:[%s147 + $0x10] sm:$0xf]
    %v153 = vld [vmem:[%s147 + $0x14] sm:$0xf]
    %v154 = vld [vmem:[%s147 + $0x18] sm:$0xf]
    %v155 = vld [vmem:[%s147 + $0x1c] sm:$0xf]
    %v156 = vld [vmem:[%s147 + $0x20] sm:$0xf]
    %v157 = vld [vmem:[%s147 + $0x24] sm:$0xf]
    %v158 = vld [vmem:[%s147 + $0x28] sm:$0xf]
    %v159 = vld [vmem:[%s147 + $0x2c] sm:$0xf]
    %v160 = vld [vmem:[%s147 + $0x30] sm:$0xf]
    %v161 = vld [vmem:[%s147 + $0x34] sm:$0xf]
    %v162 = vld [vmem:[%s147 + $0x38] sm:$0xf]
    %v163 = vld [vmem:[%s147 + $0x3c] sm:$0xf]
    %s164 = scalar_lea.vmem %s2, 1
    %v165 = vld [vmem:[%s164] sm:$0x1]
    %v167 = vlaneseq
    %v168 = vshrl.u32 %v167, 7
    %v169 = vsub.s32 0, %v168
    %v170 = vrot.slane %v165, %v169
    %v188 = vunpack.c.l.b16 %v148
    %v189 = vunpack.c.l.b16 %v149
    %v190 = vunpack.c.l.b16 %v150
    %v191 = vunpack.c.l.b16 %v151
    %v192 = vunpack.c.l.b16 %v152
    %v193 = vunpack.c.l.b16 %v153
    %v194 = vunpack.c.l.b16 %v154
    %v195 = vunpack.c.l.b16 %v155
    %v196 = vunpack.c.l.b16 %v156
    %v197 = vunpack.c.l.b16 %v157
    %v198 = vunpack.c.l.b16 %v158
    %v199 = vunpack.c.l.b16 %v159
    %v200 = vunpack.c.l.b16 %v160
    %v201 = vunpack.c.l.b16 %v161
    %v202 = vunpack.c.l.b16 %v162
    %v203 = vunpack.c.l.b16 %v163
    %v204 = vpack.c.b16 %v189, %v188
    %v205 = vpack.c.b16 %v191, %v190
    %v206 = vpack.c.b16 %v193, %v192
    %v207 = vpack.c.b16 %v195, %v194
    %v208 = vpack.c.b16 %v197, %v196
    %v209 = vpack.c.b16 %v199, %v198
    %v210 = vpack.c.b16 %v201, %v200
    %v211 = vpack.c.b16 %v203, %v202
    %220 = vmatprep.subr.bf16.mxu0 0
    %221 = vmatpush1.bf16.msra.mxu0 %v204
    %222 = vmatprep.subr.bf16.mxu0 0
    %223 = vmatpush1.bf16.msra.mxu0 %v205
    %224 = vmatprep.subr.bf16.mxu0 0
    %225 = vmatpush1.bf16.msra.mxu0 %v206
    %226 = vmatprep.subr.bf16.mxu0 0
    %227 = vmatpush1.bf16.msra.mxu0 %v207
    %228 = vmatprep.subr.bf16.mxu0 0
    %229 = vmatpush1.bf16.msra.mxu0 %v208
    %230 = vmatprep.subr.bf16.mxu0 0
    %231 = vmatpush1.bf16.msra.mxu0 %v209
    %232 = vmatprep.subr.bf16.mxu0 0
    %233 = vmatpush1.bf16.msra.mxu0 %v210
    %234 = vmatprep.subr.bf16.mxu0 0
    %235 = vmatpush1.bf16.msra.mxu0 %v211
    %236 = vmatprep.subr.bf16.mxu0 0
    %237 = vmatpush1.bf16.msra.mxu0 0
    %238 = vmatprep.subr.bf16.mxu0 0
    %239 = vmatpush1.bf16.msra.mxu0 0
    %240 = vmatprep.subr.bf16.mxu0 0
    %241 = vmatpush1.bf16.msra.mxu0 0
    %242 = vmatprep.subr.bf16.mxu0 0
    %243 = vmatpush1.bf16.msra.mxu0 0
    %244 = vmatprep.subr.bf16.mxu0 0
    %245 = vmatpush1.bf16.msra.mxu0 0
    %246 = vmatprep.subr.bf16.mxu0 0
    %247 = vmatpush1.bf16.msra.mxu0 0
    %248 = vmatprep.subr.bf16.mxu0 0
    %249 = vmatpush1.bf16.msra.mxu0 0
    %250 = vmatprep.subr.bf16.mxu0 0
    %251 = vmatpush1.bf16.msra.mxu0 0
    %252 = vmatprep.mubr.bf16.mxu0 0
    %253 = vmatmul.mubr.bf16.gmra.mrb[0].mxu0 %v146
    %v254 = vpop.f32.mrb[0].mxu0
    %v255 = vadd.f32 %v170, %v254
    %v256 = vpop.f32.mrb[0].mxu0
    %v257 = vpop.f32.mrb[0].mxu0
    %v258 = vpop.f32.mrb[0].mxu0
    %259 = vdwg.mxu0
    %v260 = vmul.f32 %v255, 0.5
    %v261 = vtanh.pop %v260
    %v262 = vmul.f32 %v261, 0.5
    %v263 = vadd.f32 %v262, 0.5
    %v264 = vpack.c.bf16 %v263, %v263
    %s265 = scalar_lea.vmem [#allocation2], 128
    %v266 = vld [vmem:[%s265] sm:$0xf]
    %v267 = vld [vmem:[%s265 + $0x4] sm:$0xf]
    %v268 = vld [vmem:[%s265 + $0x8] sm:$0xf]
    %v269 = vld [vmem:[%s265 + $0xc] sm:$0xf]
    %v270 = vld [vmem:[%s265 + $0x10] sm:$0xf]
    %v271 = vld [vmem:[%s265 + $0x14] sm:$0xf]
    %v272 = vld [vmem:[%s265 + $0x18] sm:$0xf]
    %v273 = vld [vmem:[%s265 + $0x1c] sm:$0xf]
    %v274 = vld [vmem:[%s265 + $0x20] sm:$0xf]
    %v275 = vld [vmem:[%s265 + $0x24] sm:$0xf]
    %v276 = vld [vmem:[%s265 + $0x28] sm:$0xf]
    %v277 = vld [vmem:[%s265 + $0x2c] sm:$0xf]
    %v278 = vld [vmem:[%s265 + $0x30] sm:$0xf]
    %v279 = vld [vmem:[%s265 + $0x34] sm:$0xf]
    %v280 = vld [vmem:[%s265 + $0x38] sm:$0xf]
    %v281 = vld [vmem:[%s265 + $0x3c] sm:$0xf]
    %s282 = scalar_lea.vmem %s2, 2
    %v283 = vld [vmem:[%s282] sm:$0x1]
    %v285 = vlaneseq
    %v286 = vshrl.u32 %v285, 7
    %v287 = vsub.s32 0, %v286
    %v288 = vrot.slane %v283, %v287
    %v306 = vunpack.c.l.b16 %v266
    %v307 = vunpack.c.l.b16 %v267
    %v308 = vunpack.c.l.b16 %v268
    %v309 = vunpack.c.l.b16 %v269
    %v310 = vunpack.c.l.b16 %v270
    %v311 = vunpack.c.l.b16 %v271
    %v312 = vunpack.c.l.b16 %v272
    %v313 = vunpack.c.l.b16 %v273
    %v314 = vunpack.c.l.b16 %v274
    %v315 = vunpack.c.l.b16 %v275
    %v316 = vunpack.c.l.b16 %v276
    %v317 = vunpack.c.l.b16 %v277
    %v318 = vunpack.c.l.b16 %v278
    %v319 = vunpack.c.l.b16 %v279
    %v320 = vunpack.c.l.b16 %v280
    %v321 = vunpack.c.l.b16 %v281
    %v322 = vpack.c.b16 %v307, %v306
    %v323 = vpack.c.b16 %v309, %v308
    %v324 = vpack.c.b16 %v311, %v310
    %v325 = vpack.c.b16 %v313, %v312
    %v326 = vpack.c.b16 %v315, %v314
    %v327 = vpack.c.b16 %v317, %v316
    %v328 = vpack.c.b16 %v319, %v318
    %v329 = vpack.c.b16 %v321, %v320
    %338 = vmatprep.subr.bf16.mxu0 0
    %339 = vmatpush1.bf16.msra.mxu0 %v322
    %340 = vmatprep.subr.bf16.mxu0 0
    %341 = vmatpush1.bf16.msra.mxu0 %v323
    %342 = vmatprep.subr.bf16.mxu0 0
    %343 = vmatpush1.bf16.msra.mxu0 %v324
    %344 = vmatprep.subr.bf16.mxu0 0
    %345 = vmatpush1.bf16.msra.mxu0 %v325
    %346 = vmatprep.subr.bf16.mxu0 0
    %347 = vmatpush1.bf16.msra.mxu0 %v326
    %348 = vmatprep.subr.bf16.mxu0 0
    %349 = vmatpush1.bf16.msra.mxu0 %v327
    %350 = vmatprep.subr.bf16.mxu0 0
    %351 = vmatpush1.bf16.msra.mxu0 %v328
    %352 = vmatprep.subr.bf16.mxu0 0
    %353 = vmatpush1.bf16.msra.mxu0 %v329
    %354 = vmatprep.subr.bf16.mxu0 0
    %355 = vmatpush1.bf16.msra.mxu0 0
    %356 = vmatprep.subr.bf16.mxu0 0
    %357 = vmatpush1.bf16.msra.mxu0 0
    %358 = vmatprep.subr.bf16.mxu0 0
    %359 = vmatpush1.bf16.msra.mxu0 0
    %360 = vmatprep.subr.bf16.mxu0 0
    %361 = vmatpush1.bf16.msra.mxu0 0
    %362 = vmatprep.subr.bf16.mxu0 0
    %363 = vmatpush1.bf16.msra.mxu0 0
    %364 = vmatprep.subr.bf16.mxu0 0
    %365 = vmatpush1.bf16.msra.mxu0 0
    %366 = vmatprep.subr.bf16.mxu0 0
    %367 = vmatpush1.bf16.msra.mxu0 0
    %368 = vmatprep.subr.bf16.mxu0 0
    %369 = vmatpush1.bf16.msra.mxu0 0
    %370 = vmatprep.mubr.bf16.mxu0 0
    %371 = vmatmul.mubr.bf16.gmra.mrb[0].mxu0 %v264
    %v372 = vpop.f32.mrb[0].mxu0
    %v373 = vadd.f32 %v288, %v372
    %v374 = vpop.f32.mrb[0].mxu0
    %v375 = vpop.f32.mrb[0].mxu0
    %v376 = vpop.f32.mrb[0].mxu0
    %377 = vdwg.mxu0
    %v378 = vmul.f32 %v373, 0.5
    %v379 = vtanh.pop %v378
    %v380 = vmul.f32 %v379, 0.5
    %v381 = vadd.f32 %v380, 0.5
    %v382 = vpack.c.bf16 %v381, %v381
    %s383 = scalar_lea.vmem [#allocation2], 192
    %v384 = vld [vmem:[%s383] sm:$0xf]
    %v385 = vld [vmem:[%s383 + $0x4] sm:$0xf]
    %v386 = vld [vmem:[%s383 + $0x8] sm:$0xf]
    %v387 = vld [vmem:[%s383 + $0xc] sm:$0xf]
    %v388 = vld [vmem:[%s383 + $0x10] sm:$0xf]
    %v389 = vld [vmem:[%s383 + $0x14] sm:$0xf]
    %v390 = vld [vmem:[%s383 + $0x18] sm:$0xf]
    %v391 = vld [vmem:[%s383 + $0x1c] sm:$0xf]
    %v392 = vld [vmem:[%s383 + $0x20] sm:$0xf]
    %v393 = vld [vmem:[%s383 + $0x24] sm:$0xf]
    %v394 = vld [vmem:[%s383 + $0x28] sm:$0xf]
    %v395 = vld [vmem:[%s383 + $0x2c] sm:$0xf]
    %v396 = vld [vmem:[%s383 + $0x30] sm:$0xf]
    %v397 = vld [vmem:[%s383 + $0x34] sm:$0xf]
    %v398 = vld [vmem:[%s383 + $0x38] sm:$0xf]
    %v399 = vld [vmem:[%s383 + $0x3c] sm:$0xf]
    %s400 = scalar_lea.vmem %s2, 3
    %v401 = vld [vmem:[%s400] sm:$0x1]
    %v403 = vlaneseq
    %v404 = vshrl.u32 %v403, 7
    %v405 = vsub.s32 0, %v404
    %v406 = vrot.slane %v401, %v405
    %v424 = vunpack.c.l.b16 %v384
    %v425 = vunpack.c.l.b16 %v385
    %v426 = vunpack.c.l.b16 %v386
    %v427 = vunpack.c.l.b16 %v387
    %v428 = vunpack.c.l.b16 %v388
    %v429 = vunpack.c.l.b16 %v389
    %v430 = vunpack.c.l.b16 %v390
    %v431 = vunpack.c.l.b16 %v391
    %v432 = vunpack.c.l.b16 %v392
    %v433 = vunpack.c.l.b16 %v393
    %v434 = vunpack.c.l.b16 %v394
    %v435 = vunpack.c.l.b16 %v395
    %v436 = vunpack.c.l.b16 %v396
    %v437 = vunpack.c.l.b16 %v397
    %v438 = vunpack.c.l.b16 %v398
    %v439 = vunpack.c.l.b16 %v399
    %v440 = vpack.c.b16 %v425, %v424
    %v441 = vpack.c.b16 %v427, %v426
    %v442 = vpack.c.b16 %v429, %v428
    %v443 = vpack.c.b16 %v431, %v430
    %v444 = vpack.c.b16 %v433, %v432
    %v445 = vpack.c.b16 %v435, %v434
    %v446 = vpack.c.b16 %v437, %v436
    %v447 = vpack.c.b16 %v439, %v438
    %456 = vmatprep.subr.bf16.mxu0 0
    %457 = vmatpush1.bf16.msra.mxu0 %v440
    %458 = vmatprep.subr.bf16.mxu0 0
    %459 = vmatpush1.bf16.msra.mxu0 %v441
    %460 = vmatprep.subr.bf16.mxu0 0
    %461 = vmatpush1.bf16.msra.mxu0 %v442
    %462 = vmatprep.subr.bf16.mxu0 0
    %463 = vmatpush1.bf16.msra.mxu0 %v443
    %464 = vmatprep.subr.bf16.mxu0 0
    %465 = vmatpush1.bf16.msra.mxu0 %v444
    %466 = vmatprep.subr.bf16.mxu0 0
    %467 = vmatpush1.bf16.msra.mxu0 %v445
    %468 = vmatprep.subr.bf16.mxu0 0
    %469 = vmatpush1.bf16.msra.mxu0 %v446
    %470 = vmatprep.subr.bf16.mxu0 0
    %471 = vmatpush1.bf16.msra.mxu0 %v447
    %472 = vmatprep.subr.bf16.mxu0 0
    %473 = vmatpush1.bf16.msra.mxu0 0
    %474 = vmatprep.subr.bf16.mxu0 0
    %475 = vmatpush1.bf16.msra.mxu0 0
    %476 = vmatprep.subr.bf16.mxu0 0
    %477 = vmatpush1.bf16.msra.mxu0 0
    %478 = vmatprep.subr.bf16.mxu0 0
    %479 = vmatpush1.bf16.msra.mxu0 0
    %480 = vmatprep.subr.bf16.mxu0 0
    %481 = vmatpush1.bf16.msra.mxu0 0
    %482 = vmatprep.subr.bf16.mxu0 0
    %483 = vmatpush1.bf16.msra.mxu0 0
    %484 = vmatprep.subr.bf16.mxu0 0
    %485 = vmatpush1.bf16.msra.mxu0 0
    %486 = vmatprep.subr.bf16.mxu0 0
    %487 = vmatpush1.bf16.msra.mxu0 0
    %488 = vmatprep.mubr.bf16.mxu0 0
    %489 = vmatmul.mubr.bf16.gmra.mrb[0].mxu0 %v382
    %v490 = vpop.f32.mrb[0].mxu0
    %v491 = vadd.f32 %v406, %v490
    %v492 = vpop.f32.mrb[0].mxu0
    %v493 = vpop.f32.mrb[0].mxu0
    %v494 = vpop.f32.mrb[0].mxu0
    %495 = vdwg.mxu0
    %v496 = vmul.f32 %v491, 0.5
    %v497 = vtanh.pop %v496
    %v498 = vmul.f32 %v497, 0.5
    %v499 = vadd.f32 %v498, 0.5
    %500 = vst [vmem:[%s3] sm:$0xff] %v499
    // Predicated region
    $region18: #{mlp_funnel_forward.1} parent=1 // pred_check
      _
    $region19: #{mlp_funnel_forward.1} parent=1 // pred_check_branch
      %502 = sbr.rel (0) target = $region21
    $region20: #{mlp_funnel_forward.1} parent=1 // pred_region
      _
    $region21: #{mlp_funnel_forward.1} parent=1 // pred_fallthru
      _
    // Predicated region
    $region22: #{mlp_funnel_forward.1} parent=1 // pred_check
      _
    $region23: #{mlp_funnel_forward.1} parent=1 // pred_check_branch
      %504 = sbr.rel (0) target = $region25
    $region24: #{mlp_funnel_forward.1} parent=1 // pred_region
      _
    $region25: #{mlp_funnel_forward.1} parent=1 // pred_fallthru
      _
    %505 = vsyncpa [#allocation3], 1

</llo_original>
